<compile_context>
chip_gen: v7x
topology: tpu7x:2x2x1
jax: 0.10.0
libtpu: 0.0.40
codegen_flags: <defaults>
</compile_context>

<pallas_src>
import functools

import jax
import jax.numpy as jnp
from jax.experimental import pallas as pl
from jax.experimental.pallas import tpu as pltpu


OUT_LANES = 128


def _round8(n):
    return ((n + 7) // 8) * 8


def _slab_layout(event_classes, hidden_dim, mlp_dim):
    """Sublane offsets for the packed weight slab (all multiples of 8)."""
    C, H = event_classes, hidden_dim
    lanes = max(OUT_LANES, 4 * H)
    o_wih = 0
    o_whh = o_wih + _round8(C + 1)
    o_b = o_whh + _round8(H)
    o_wmlp = o_b + 8
    o_bmlp = o_wmlp + _round8(H)
    o_whd = o_bmlp + 8
    o_bhd = o_whd + lanes
    rows = o_bhd + 8
    return dict(lanes=lanes, rows=rows, o_wih=o_wih, o_whh=o_whh, o_b=o_b,
                o_wmlp=o_wmlp, o_bmlp=o_bmlp, o_whd=o_whd, o_bhd=o_bhd)


# ---------------------------------------------------------------------------
# Pallas kernel: 2 input slabs, hoisted input projection, unrolled LSTM,
# fused (event | time) head, in-kernel log_softmax over the event lanes.
# ---------------------------------------------------------------------------
def erpp_kernel(act_ref,    # [(T+1)*B, 2] f32: rows 0:T*B = (time, event_id)
                            #                   rows T*B:   = (length mask, 0)
                w_ref,      # [rows, lanes] f32 packed weight slab
                out_ref,    # [B, lanes]    f32 [log_softmax(event) | time | 0]
                *, batch, seq_len, event_classes, hidden_dim, mlp_dim):
    B, T, C, H = batch, seq_len, event_classes, hidden_dim
    TB = T * B
    lay = _slab_layout(C, H, mlp_dim)
    lanes = lay["lanes"]

    # ---- static, 8-aligned sub-views of the single weight slab ----
    wih = w_ref[lay["o_wih"]:lay["o_wih"] + C + 1, :]      # [C+1, lanes]
    whh = w_ref[lay["o_whh"]:lay["o_whh"] + H, :]          # [H,   lanes]
    b_lstm = w_ref[lay["o_b"]:lay["o_b"] + 1, :]           # [1,   lanes]
    wmlp = w_ref[lay["o_wmlp"]:lay["o_wmlp"] + H, :]       # [H,   lanes]
    bmlp = w_ref[lay["o_bmlp"]:lay["o_bmlp"] + 1, :]       # [1,   lanes]
    whead = w_ref[lay["o_whd"]:lay["o_whd"] + lanes, :]    # [lanes, lanes]
    bhead = w_ref[lay["o_bhd"]:lay["o_bhd"] + 1, :]        # [1,   lanes]

    # ---- Build X = [time | one-hot(event)] in-kernel, project for ALL
    #      timesteps with a single MXU call (off the serial chain). ----
    te = act_ref[0:TB, :]                                   # [T*B, 2]
    time_col = te[:, 0:1]                                   # [T*B, 1]
    ev = te[:, 1:2].astype(jnp.int32)                       # [T*B, 1]
    feat = jax.lax.broadcasted_iota(jnp.int32, (TB, C + 1), 1)
    x = jnp.where(feat == 0, time_col,
                  (ev + 1 == feat).astype(jnp.float32))     # [T*B, C+1]
    gates_pre = (jnp.dot(x, wih, preferred_element_type=jnp.float32)
                 + b_lstm)                                  # [T*B, 4H]

    # ---- LSTM recurrence, fully unrolled (T static & small). ----
    # TODO(synk): keep W_hh resident in the MXU (matmul_push_rhs on v5e/v6e,
    #             MRB accumulation on v7x) instead of portable jnp.dot.
    h = jnp.zeros((B, H), jnp.float32)
    c = jnp.zeros((B, H), jnp.float32)
    for t in range(T):
        gates = gates_pre[t * B:(t + 1) * B, :] + jnp.dot(
            h, whh, preferred_element_type=jnp.float32)     # [B, 4H]
        sig = jax.nn.sigmoid(gates)     # one full-vreg EUP sweep
        tnh = jnp.tanh(gates)           # one full-vreg EUP sweep
        i_g = sig[:, 0:H]
        f_g = sig[:, H:2 * H]
        g_g = tnh[:, 2 * H:3 * H]
        o_g = sig[:, 3 * H:4 * H]
        c = f_g * c + i_g * g_g
        h = o_g * jnp.tanh(c)

    # pad_packed_sequence semantics: output[:, -1, :] is zero if length < T.
    mask = act_ref[TB:TB + B, 0:1]                          # [B, 1]
    last = h * mask                                         # [B, H]

    # MLP head (padded lanes: sigmoid(0)=0.5, killed by zero whead rows).
    mlp = jax.nn.sigmoid(
        jnp.dot(last, wmlp, preferred_element_type=jnp.float32) + bmlp)

    # Fused event/time heads: one lane-dense matmul, log_softmax over the
    # first C lanes only (lane C carries the raw time output, rest are 0).
    head = (jnp.dot(mlp, whead, preferred_element_type=jnp.float32)
            + bhead)                                        # [B, lanes]
    lane = jax.lax.broadcasted_iota(jnp.int32, head.shape, 1)
    ev_lanes = lane < C
    masked = jnp.where(ev_lanes, head, jnp.float32(-1e30))
    m = jnp.max(masked, axis=1, keepdims=True)
    e = jnp.exp(masked - m)                                 # 0 in masked lanes
    lse = jnp.log(jnp.sum(e, axis=1, keepdims=True)) + m
    out_ref[...] = jnp.where(ev_lanes, head - lse, head)


# ---------------------------------------------------------------------------
# Weight packing — run ONCE per parameter set, outside the hot path.
# ---------------------------------------------------------------------------
def pack_erpp_weights(params, event_classes, hidden_dim, mlp_dim):
    C, H, M = event_classes, hidden_dim, mlp_dim
    G = 4 * H
    lay = _slab_layout(C, H, M)
    slab = jnp.zeros((lay["rows"], lay["lanes"]), jnp.float32)
    slab = slab.at[lay["o_wih"]:lay["o_wih"] + C + 1, :G].set(
        params["w_ih"].T.astype(jnp.float32))
    slab = slab.at[lay["o_whh"]:lay["o_whh"] + H, :G].set(
        params["w_hh"].T.astype(jnp.float32))
    slab = slab.at[lay["o_b"], :G].set(
        (params["b_ih"] + params["b_hh"]).astype(jnp.float32))
    slab = slab.at[lay["o_wmlp"]:lay["o_wmlp"] + H, :M].set(
        params["w_mlp"].T.astype(jnp.float32))
    slab = slab.at[lay["o_bmlp"], :M].set(params["b_mlp"].astype(jnp.float32))
    slab = slab.at[lay["o_whd"]:lay["o_whd"] + M, :C].set(
        params["w_ev"].T.astype(jnp.float32))
    slab = slab.at[lay["o_whd"]:lay["o_whd"] + M, C].set(
        params["w_time"].reshape(-1).astype(jnp.float32))
    slab = slab.at[lay["o_bhd"], :C].set(params["b_ev"].astype(jnp.float32))
    slab = slab.at[lay["o_bhd"], C].set(params["b_time"].astype(jnp.float32)[0])
    return slab


# ---------------------------------------------------------------------------
# Per-call wrapper (jitted): tiny activation pack + one pallas_call.
# ---------------------------------------------------------------------------
@functools.partial(jax.jit, static_argnums=(3, 4, 5))
def erpp_forward(inp, length, w_slab, event_classes, hidden_dim, mlp_dim):
    B, T, _ = inp.shape
    C, H, M = event_classes, hidden_dim, mlp_dim
    lay = _slab_layout(C, H, M)
    B_pad = max(8, _round8(B))
    TB = T * B_pad

    # Activation slab: time-major (time, event_id) rows + mask rows.
    time_tm = jnp.zeros((T, B_pad), jnp.float32).at[:, :B].set(
        inp[:, :, 0].astype(jnp.float32).T)
    event_tm = jnp.zeros((T, B_pad), jnp.float32).at[:, :B].set(
        inp[:, :, 1].astype(jnp.float32).T)
    mask = jnp.zeros((B_pad,), jnp.float32).at[:B].set(
        (length.astype(jnp.int32) == T).astype(jnp.float32))
    act = jnp.zeros((TB + B_pad, 2), jnp.float32)
    act = act.at[:TB, 0].set(time_tm.reshape(TB))
    act = act.at[:TB, 1].set(event_tm.reshape(TB))
    act = act.at[TB:, 0].set(mask)

    vmem = pl.BlockSpec(memory_space=pltpu.MemorySpace.VMEM)
    out = pl.pallas_call(
        functools.partial(erpp_kernel, batch=B_pad, seq_len=T,
                          event_classes=C, hidden_dim=H, mlp_dim=M),
        out_shape=jax.ShapeDtypeStruct((B_pad, lay["lanes"]), jnp.float32),
        in_specs=[vmem, vmem],
        out_specs=vmem,
    )(act, w_slab)

    time_out = out[:B, C:C + 1]                  # time prediction
    event_out = out[:B, :C]                      # log-probs
    return time_out, event_out


# ---------------------------------------------------------------------------
# Pure-JAX reference (for a correctness sanity check).
# ---------------------------------------------------------------------------
def erpp_reference(inp, length, params, event_classes, hidden_dim, mlp_dim):
    B, T, _ = inp.shape
    time_seq = inp[:, :, 0:1].astype(jnp.float32)
    event_seq = inp[:, :, 1].astype(jnp.int32)
    one_hot = jax.nn.one_hot(event_seq, event_classes, dtype=jnp.float32)
    x = jnp.concatenate([time_seq, one_hot], axis=2)            # [B, T, I]

    H = hidden_dim
    w_ih, w_hh = params["w_ih"], params["w_hh"]
    b = params["b_ih"] + params["b_hh"]

    def step(carry, x_t):
        h, c = carry
        gates = x_t @ w_ih.T + h @ w_hh.T + b
        i_g = jax.nn.sigmoid(gates[:, 0:H])
        f_g = jax.nn.sigmoid(gates[:, H:2 * H])
        g_g = jnp.tanh(gates[:, 2 * H:3 * H])
        o_g = jax.nn.sigmoid(gates[:, 3 * H:4 * H])
        c = f_g * c + i_g * g_g
        h = o_g * jnp.tanh(c)
        return (h, c), None

    (h_last, _), _ = jax.lax.scan(
        step, (jnp.zeros((B, H)), jnp.zeros((B, H))),
        jnp.transpose(x, (1, 0, 2)))
    mask = (length.astype(jnp.int32) == T).astype(jnp.float32)[:, None]
    last = h_last * mask
    mlp = jax.nn.sigmoid(last @ params["w_mlp"].T + params["b_mlp"])
    logits = mlp @ params["w_ev"].T + params["b_ev"]
    event_out = jax.nn.log_softmax(logits, axis=1)
    time_out = mlp @ params["w_time"].T + params["b_time"]
    return time_out, event_out


if __name__ == "__main__":
    # Small config consistent with the module.
    EVENT_CLASSES = 15      # -> LSTM input dim = 16
    RNN_HIDDEN_DIM = 32
    MLP_DIM = 16
    B, T = 4, 6

    key = jax.random.PRNGKey(0)
    ks = jax.random.split(key, 12)

    I = EVENT_CLASSES + 1
    scale = 1.0 / jnp.sqrt(RNN_HIDDEN_DIM)
    params = {
        "w_ih":  jax.random.uniform(ks[0], (4 * RNN_HIDDEN_DIM, I),
                                    minval=-scale, maxval=scale),
        "w_hh":  jax.random.uniform(ks[1], (4 * RNN_HIDDEN_DIM, RNN_HIDDEN_DIM),
                                    minval=-scale, maxval=scale),
        "b_ih":  jax.random.uniform(ks[2], (4 * RNN_HIDDEN_DIM,),
                                    minval=-scale, maxval=scale),
        "b_hh":  jax.random.uniform(ks[3], (4 * RNN_HIDDEN_DIM,),
                                    minval=-scale, maxval=scale),
        "w_mlp": jax.random.uniform(ks[4], (MLP_DIM, RNN_HIDDEN_DIM),
                                    minval=-0.1, maxval=0.1),
        "b_mlp": jax.random.uniform(ks[5], (MLP_DIM,), minval=-0.1, maxval=0.1),
        "w_ev":  jax.random.uniform(ks[6], (EVENT_CLASSES, MLP_DIM),
                                    minval=-0.1, maxval=0.1),
        "b_ev":  jax.random.uniform(ks[7], (EVENT_CLASSES,),
                                    minval=-0.1, maxval=0.1),
        "w_time": jax.random.uniform(ks[8], (1, MLP_DIM),
                                     minval=-0.1, maxval=0.1),
        "b_time": jax.random.uniform(ks[9], (1,), minval=-0.1, maxval=0.1),
    }
    params = {k: v.astype(jnp.float32) for k, v in params.items()}

    # input[:, :, 0] = inter-event times (float), input[:, :, 1] = event ids.
    times = jax.random.uniform(ks[10], (B, T, 1), minval=0.0, maxval=2.0)
    events = jax.random.randint(ks[11], (B, T, 1), 0, EVENT_CLASSES)
    inp = jnp.concatenate([times, events.astype(jnp.float32)], axis=2)
    # pack_padded_sequence expects lengths sorted descending, max == T.
    length = jnp.array([T, T, T - 1, T - 2], dtype=jnp.int32)

    # Pack weights ONCE (hoisted out of the hot path), then run forward.
    w_slab = jax.block_until_ready(
        pack_erpp_weights(params, EVENT_CLASSES, RNN_HIDDEN_DIM, MLP_DIM))

    time_out, event_out = erpp_forward(
        inp, length, w_slab, EVENT_CLASSES, RNN_HIDDEN_DIM, MLP_DIM)
    jax.block_until_ready((time_out, event_out))

    # Sanity check against pure-JAX reference.
    t_ref, e_ref = erpp_reference(
        inp, length, params, EVENT_CLASSES, RNN_HIDDEN_DIM, MLP_DIM)
    assert time_out.shape == (B, 1) and event_out.shape == (B, EVENT_CLASSES)
    assert jnp.allclose(time_out, t_ref, atol=1e-5, rtol=1e-5)
    assert jnp.allclose(event_out, e_ref, atol=1e-5, rtol=1e-5)

    print("KERNEL_OK")
</pallas_src>

<mosaic_0001>
module attributes {stable_mosaic.version = 11 : i64} {
  func.func @erpp_kernel(%arg0: memref<56x2xf32, #tpu.memory_space<vmem>>, %arg1: memref<232x128xf32, #tpu.memory_space<vmem>>, %arg2: memref<8x128xf32, #tpu.memory_space<vmem>>) attributes {dimension_semantics = [], scalar_prefetch = 0 : i64, scratch_operands = 0 : i64, tpu.core_type = #tpu.core_type<tc>} {
    %c0 = arith.constant 0 : index
    %c0_0 = arith.constant 0 : index
    %0 = vector.load %arg1[%c0, %c0_0] : memref<232x128xf32, #tpu.memory_space<vmem>>, vector<16x128xf32>
    %c16 = arith.constant 16 : index
    %c0_1 = arith.constant 0 : index
    %1 = vector.load %arg1[%c16, %c0_1] : memref<232x128xf32, #tpu.memory_space<vmem>>, vector<32x128xf32>
    %c48 = arith.constant 48 : index
    %c0_2 = arith.constant 0 : index
    %2 = vector.load %arg1[%c48, %c0_2] : memref<232x128xf32, #tpu.memory_space<vmem>>, vector<1x128xf32>
    %c56 = arith.constant 56 : index
    %c0_3 = arith.constant 0 : index
    %3 = vector.load %arg1[%c56, %c0_3] : memref<232x128xf32, #tpu.memory_space<vmem>>, vector<32x128xf32>
    %c88 = arith.constant 88 : index
    %c0_4 = arith.constant 0 : index
    %4 = vector.load %arg1[%c88, %c0_4] : memref<232x128xf32, #tpu.memory_space<vmem>>, vector<1x128xf32>
    %c96 = arith.constant 96 : index
    %c0_5 = arith.constant 0 : index
    %5 = vector.load %arg1[%c96, %c0_5] : memref<232x128xf32, #tpu.memory_space<vmem>>, vector<128x128xf32>
    %c224 = arith.constant 224 : index
    %c0_6 = arith.constant 0 : index
    %6 = vector.load %arg1[%c224, %c0_6] : memref<232x128xf32, #tpu.memory_space<vmem>>, vector<1x128xf32>
    %c0_7 = arith.constant 0 : index
    %c0_8 = arith.constant 0 : index
    %7 = vector.load %arg0[%c0_7, %c0_8] : memref<56x2xf32, #tpu.memory_space<vmem>>, vector<48x2xf32>
    %8 = vector.extract_strided_slice %7 {offsets = [0, 0], sizes = [48, 1], strides = [1, 1]} : vector<48x2xf32> to vector<48x1xf32>
    %9 = vector.extract_strided_slice %7 {offsets = [0, 1], sizes = [48, 1], strides = [1, 1]} : vector<48x2xf32> to vector<48x1xf32>
    %10 = arith.fptosi %9 : vector<48x1xf32> to vector<48x1xi32>
    %11 = tpu.iota {dimensions = array<i32: 1>} : vector<48x16xi32>
    %c0_i32 = arith.constant 0 : i32
    %12 = vector.broadcast %c0_i32 : i32 to vector<48x16xi32>
    %13 = arith.cmpi eq, %11, %12 : vector<48x16xi32>
    %c1_i32 = arith.constant 1 : i32
    %14 = vector.broadcast %c1_i32 : i32 to vector<48x1xi32>
    %15 = arith.addi %10, %14 : vector<48x1xi32>
    %16 = vector.broadcast %15 : vector<48x1xi32> to vector<48x16xi32>
    %17 = arith.cmpi eq, %16, %11 : vector<48x16xi32>
    %18 = arith.extui %17 : vector<48x16xi1> to vector<48x16xi32>
    %19 = arith.sitofp %18 : vector<48x16xi32> to vector<48x16xf32>
    %20 = vector.shape_cast %8 : vector<48x1xf32> to vector<48x1xf32>
    %21 = vector.broadcast %20 : vector<48x1xf32> to vector<48x16xf32>
    %22 = arith.select %13, %21, %19 : vector<48x16xi1>, vector<48x16xf32>
    %cst = arith.constant dense<0.000000e+00> : vector<48x128xf32>
    %23 = tpu.matmul %22, %0, %cst {dimension_numbers = #tpu.dot_dimension_numbers<[1], [0], [0], [1], [0, 0, 1, 1], [], []>} : vector<48x16xf32>, vector<16x128xf32>, vector<48x128xf32> -> vector<48x128xf32>
    %24 = vector.broadcast %2 : vector<1x128xf32> to vector<48x128xf32>
    %25 = arith.addf %23, %24 : vector<48x128xf32>
    %cst_9 = arith.constant 0.000000e+00 : f32
    %26 = vector.broadcast %cst_9 : f32 to vector<8x32xf32>
    %cst_10 = arith.constant 0.000000e+00 : f32
    %27 = vector.broadcast %cst_10 : f32 to vector<8x32xf32>
    %28 = vector.extract_strided_slice %25 {offsets = [0, 0], sizes = [8, 128], strides = [1, 1]} : vector<48x128xf32> to vector<8x128xf32>
    %cst_11 = arith.constant dense<0.000000e+00> : vector<8x128xf32>
    %29 = tpu.matmul %26, %1, %cst_11 {dimension_numbers = #tpu.dot_dimension_numbers<[1], [0], [0], [1], [0, 0, 1, 1], [], []>} : vector<8x32xf32>, vector<32x128xf32>, vector<8x128xf32> -> vector<8x128xf32>
    %30 = arith.addf %28, %29 : vector<8x128xf32>
    %31 = arith.negf %30 : vector<8x128xf32>
    %32 = math.exp %31 : vector<8x128xf32>
    %cst_12 = arith.constant 1.000000e+00 : f32
    %33 = vector.broadcast %cst_12 : f32 to vector<8x128xf32>
    %34 = arith.addf %33, %32 : vector<8x128xf32>
    %35 = arith.divf %33, %34 : vector<8x128xf32>
    %36 = math.tanh %30 : vector<8x128xf32>
    %37 = vector.extract_strided_slice %35 {offsets = [0, 0], sizes = [8, 32], strides = [1, 1]} : vector<8x128xf32> to vector<8x32xf32>
    %38 = vector.extract_strided_slice %35 {offsets = [0, 32], sizes = [8, 32], strides = [1, 1]} : vector<8x128xf32> to vector<8x32xf32>
    %39 = vector.extract_strided_slice %36 {offsets = [0, 64], sizes = [8, 32], strides = [1, 1]} : vector<8x128xf32> to vector<8x32xf32>
    %40 = vector.extract_strided_slice %35 {offsets = [0, 96], sizes = [8, 32], strides = [1, 1]} : vector<8x128xf32> to vector<8x32xf32>
    %41 = arith.mulf %38, %27 : vector<8x32xf32>
    %42 = arith.mulf %37, %39 : vector<8x32xf32>
    %43 = arith.addf %41, %42 : vector<8x32xf32>
    %44 = math.tanh %43 : vector<8x32xf32>
    %45 = arith.mulf %40, %44 : vector<8x32xf32>
    %46 = vector.extract_strided_slice %25 {offsets = [8, 0], sizes = [8, 128], strides = [1, 1]} : vector<48x128xf32> to vector<8x128xf32>
    %cst_13 = arith.constant dense<0.000000e+00> : vector<8x128xf32>
    %47 = tpu.matmul %45, %1, %cst_13 {dimension_numbers = #tpu.dot_dimension_numbers<[1], [0], [0], [1], [0, 0, 1, 1], [], []>} : vector<8x32xf32>, vector<32x128xf32>, vector<8x128xf32> -> vector<8x128xf32>
    %48 = arith.addf %46, %47 : vector<8x128xf32>
    %49 = arith.negf %48 : vector<8x128xf32>
    %50 = math.exp %49 : vector<8x128xf32>
    %cst_14 = arith.constant 1.000000e+00 : f32
    %51 = vector.broadcast %cst_14 : f32 to vector<8x128xf32>
    %52 = arith.addf %51, %50 : vector<8x128xf32>
    %53 = arith.divf %51, %52 : vector<8x128xf32>
    %54 = math.tanh %48 : vector<8x128xf32>
    %55 = vector.extract_strided_slice %53 {offsets = [0, 0], sizes = [8, 32], strides = [1, 1]} : vector<8x128xf32> to vector<8x32xf32>
    %56 = vector.extract_strided_slice %53 {offsets = [0, 32], sizes = [8, 32], strides = [1, 1]} : vector<8x128xf32> to vector<8x32xf32>
    %57 = vector.extract_strided_slice %54 {offsets = [0, 64], sizes = [8, 32], strides = [1, 1]} : vector<8x128xf32> to vector<8x32xf32>
    %58 = vector.extract_strided_slice %53 {offsets = [0, 96], sizes = [8, 32], strides = [1, 1]} : vector<8x128xf32> to vector<8x32xf32>
    %59 = arith.mulf %56, %43 : vector<8x32xf32>
    %60 = arith.mulf %55, %57 : vector<8x32xf32>
    %61 = arith.addf %59, %60 : vector<8x32xf32>
    %62 = math.tanh %61 : vector<8x32xf32>
    %63 = arith.mulf %58, %62 : vector<8x32xf32>
    %64 = vector.extract_strided_slice %25 {offsets = [16, 0], sizes = [8, 128], strides = [1, 1]} : vector<48x128xf32> to vector<8x128xf32>
    %cst_15 = arith.constant dense<0.000000e+00> : vector<8x128xf32>
    %65 = tpu.matmul %63, %1, %cst_15 {dimension_numbers = #tpu.dot_dimension_numbers<[1], [0], [0], [1], [0, 0, 1, 1], [], []>} : vector<8x32xf32>, vector<32x128xf32>, vector<8x128xf32> -> vector<8x128xf32>
    %66 = arith.addf %64, %65 : vector<8x128xf32>
    %67 = arith.negf %66 : vector<8x128xf32>
    %68 = math.exp %67 : vector<8x128xf32>
    %cst_16 = arith.constant 1.000000e+00 : f32
    %69 = vector.broadcast %cst_16 : f32 to vector<8x128xf32>
    %70 = arith.addf %69, %68 : vector<8x128xf32>
    %71 = arith.divf %69, %70 : vector<8x128xf32>
    %72 = math.tanh %66 : vector<8x128xf32>
    %73 = vector.extract_strided_slice %71 {offsets = [0, 0], sizes = [8, 32], strides = [1, 1]} : vector<8x128xf32> to vector<8x32xf32>
    %74 = vector.extract_strided_slice %71 {offsets = [0, 32], sizes = [8, 32], strides = [1, 1]} : vector<8x128xf32> to vector<8x32xf32>
    %75 = vector.extract_strided_slice %72 {offsets = [0, 64], sizes = [8, 32], strides = [1, 1]} : vector<8x128xf32> to vector<8x32xf32>
    %76 = vector.extract_strided_slice %71 {offsets = [0, 96], sizes = [8, 32], strides = [1, 1]} : vector<8x128xf32> to vector<8x32xf32>
    %77 = arith.mulf %74, %61 : vector<8x32xf32>
    %78 = arith.mulf %73, %75 : vector<8x32xf32>
    %79 = arith.addf %77, %78 : vector<8x32xf32>
    %80 = math.tanh %79 : vector<8x32xf32>
    %81 = arith.mulf %76, %80 : vector<8x32xf32>
    %82 = vector.extract_strided_slice %25 {offsets = [24, 0], sizes = [8, 128], strides = [1, 1]} : vector<48x128xf32> to vector<8x128xf32>
    %cst_17 = arith.constant dense<0.000000e+00> : vector<8x128xf32>
    %83 = tpu.matmul %81, %1, %cst_17 {dimension_numbers = #tpu.dot_dimension_numbers<[1], [0], [0], [1], [0, 0, 1, 1], [], []>} : vector<8x32xf32>, vector<32x128xf32>, vector<8x128xf32> -> vector<8x128xf32>
    %84 = arith.addf %82, %83 : vector<8x128xf32>
    %85 = arith.negf %84 : vector<8x128xf32>
    %86 = math.exp %85 : vector<8x128xf32>
    %cst_18 = arith.constant 1.000000e+00 : f32
    %87 = vector.broadcast %cst_18 : f32 to vector<8x128xf32>
    %88 = arith.addf %87, %86 : vector<8x128xf32>
    %89 = arith.divf %87, %88 : vector<8x128xf32>
    %90 = math.tanh %84 : vector<8x128xf32>
    %91 = vector.extract_strided_slice %89 {offsets = [0, 0], sizes = [8, 32], strides = [1, 1]} : vector<8x128xf32> to vector<8x32xf32>
    %92 = vector.extract_strided_slice %89 {offsets = [0, 32], sizes = [8, 32], strides = [1, 1]} : vector<8x128xf32> to vector<8x32xf32>
    %93 = vector.extract_strided_slice %90 {offsets = [0, 64], sizes = [8, 32], strides = [1, 1]} : vector<8x128xf32> to vector<8x32xf32>
    %94 = vector.extract_strided_slice %89 {offsets = [0, 96], sizes = [8, 32], strides = [1, 1]} : vector<8x128xf32> to vector<8x32xf32>
    %95 = arith.mulf %92, %79 : vector<8x32xf32>
    %96 = arith.mulf %91, %93 : vector<8x32xf32>
    %97 = arith.addf %95, %96 : vector<8x32xf32>
    %98 = math.tanh %97 : vector<8x32xf32>
    %99 = arith.mulf %94, %98 : vector<8x32xf32>
    %100 = vector.extract_strided_slice %25 {offsets = [32, 0], sizes = [8, 128], strides = [1, 1]} : vector<48x128xf32> to vector<8x128xf32>
    %cst_19 = arith.constant dense<0.000000e+00> : vector<8x128xf32>
    %101 = tpu.matmul %99, %1, %cst_19 {dimension_numbers = #tpu.dot_dimension_numbers<[1], [0], [0], [1], [0, 0, 1, 1], [], []>} : vector<8x32xf32>, vector<32x128xf32>, vector<8x128xf32> -> vector<8x128xf32>
    %102 = arith.addf %100, %101 : vector<8x128xf32>
    %103 = arith.negf %102 : vector<8x128xf32>
    %104 = math.exp %103 : vector<8x128xf32>
    %cst_20 = arith.constant 1.000000e+00 : f32
    %105 = vector.broadcast %cst_20 : f32 to vector<8x128xf32>
    %106 = arith.addf %105, %104 : vector<8x128xf32>
    %107 = arith.divf %105, %106 : vector<8x128xf32>
    %108 = math.tanh %102 : vector<8x128xf32>
    %109 = vector.extract_strided_slice %107 {offsets = [0, 0], sizes = [8, 32], strides = [1, 1]} : vector<8x128xf32> to vector<8x32xf32>
    %110 = vector.extract_strided_slice %107 {offsets = [0, 32], sizes = [8, 32], strides = [1, 1]} : vector<8x128xf32> to vector<8x32xf32>
    %111 = vector.extract_strided_slice %108 {offsets = [0, 64], sizes = [8, 32], strides = [1, 1]} : vector<8x128xf32> to vector<8x32xf32>
    %112 = vector.extract_strided_slice %107 {offsets = [0, 96], sizes = [8, 32], strides = [1, 1]} : vector<8x128xf32> to vector<8x32xf32>
    %113 = arith.mulf %110, %97 : vector<8x32xf32>
    %114 = arith.mulf %109, %111 : vector<8x32xf32>
    %115 = arith.addf %113, %114 : vector<8x32xf32>
    %116 = math.tanh %115 : vector<8x32xf32>
    %117 = arith.mulf %112, %116 : vector<8x32xf32>
    %118 = vector.extract_strided_slice %25 {offsets = [40, 0], sizes = [8, 128], strides = [1, 1]} : vector<48x128xf32> to vector<8x128xf32>
    %cst_21 = arith.constant dense<0.000000e+00> : vector<8x128xf32>
    %119 = tpu.matmul %117, %1, %cst_21 {dimension_numbers = #tpu.dot_dimension_numbers<[1], [0], [0], [1], [0, 0, 1, 1], [], []>} : vector<8x32xf32>, vector<32x128xf32>, vector<8x128xf32> -> vector<8x128xf32>
    %120 = arith.addf %118, %119 : vector<8x128xf32>
    %121 = arith.negf %120 : vector<8x128xf32>
    %122 = math.exp %121 : vector<8x128xf32>
    %cst_22 = arith.constant 1.000000e+00 : f32
    %123 = vector.broadcast %cst_22 : f32 to vector<8x128xf32>
    %124 = arith.addf %123, %122 : vector<8x128xf32>
    %125 = arith.divf %123, %124 : vector<8x128xf32>
    %126 = math.tanh %120 : vector<8x128xf32>
    %127 = vector.extract_strided_slice %125 {offsets = [0, 0], sizes = [8, 32], strides = [1, 1]} : vector<8x128xf32> to vector<8x32xf32>
    %128 = vector.extract_strided_slice %125 {offsets = [0, 32], sizes = [8, 32], strides = [1, 1]} : vector<8x128xf32> to vector<8x32xf32>
    %129 = vector.extract_strided_slice %126 {offsets = [0, 64], sizes = [8, 32], strides = [1, 1]} : vector<8x128xf32> to vector<8x32xf32>
    %130 = vector.extract_strided_slice %125 {offsets = [0, 96], sizes = [8, 32], strides = [1, 1]} : vector<8x128xf32> to vector<8x32xf32>
    %131 = arith.mulf %128, %115 : vector<8x32xf32>
    %132 = arith.mulf %127, %129 : vector<8x32xf32>
    %133 = arith.addf %131, %132 : vector<8x32xf32>
    %134 = math.tanh %133 : vector<8x32xf32>
    %135 = arith.mulf %130, %134 : vector<8x32xf32>
    %c48_23 = arith.constant 48 : index
    %c0_24 = arith.constant 0 : index
    %136 = vector.load %arg0[%c48_23, %c0_24] : memref<56x2xf32, #tpu.memory_space<vmem>>, vector<8x1xf32>
    %137 = vector.broadcast %136 : vector<8x1xf32> to vector<8x32xf32>
    %138 = arith.mulf %135, %137 : vector<8x32xf32>
    %cst_25 = arith.constant dense<0.000000e+00> : vector<8x128xf32>
    %139 = tpu.matmul %138, %3, %cst_25 {dimension_numbers = #tpu.dot_dimension_numbers<[1], [0], [0], [1], [0, 0, 1, 1], [], []>} : vector<8x32xf32>, vector<32x128xf32>, vector<8x128xf32> -> vector<8x128xf32>
    %140 = vector.broadcast %4 : vector<1x128xf32> to vector<8x128xf32>
    %141 = arith.addf %139, %140 : vector<8x128xf32>
    %142 = arith.negf %141 : vector<8x128xf32>
    %143 = math.exp %142 : vector<8x128xf32>
    %cst_26 = arith.constant 1.000000e+00 : f32
    %144 = vector.broadcast %cst_26 : f32 to vector<8x128xf32>
    %145 = arith.addf %144, %143 : vector<8x128xf32>
    %146 = arith.divf %144, %145 : vector<8x128xf32>
    %cst_27 = arith.constant dense<0.000000e+00> : vector<8x128xf32>
    %147 = tpu.matmul %146, %5, %cst_27 {dimension_numbers = #tpu.dot_dimension_numbers<[1], [0], [0], [1], [0, 0, 1, 1], [], []>} : vector<8x128xf32>, vector<128x128xf32>, vector<8x128xf32> -> vector<8x128xf32>
    %148 = vector.broadcast %6 : vector<1x128xf32> to vector<8x128xf32>
    %149 = arith.addf %147, %148 : vector<8x128xf32>
    %150 = tpu.iota {dimensions = array<i32: 1>} : vector<8x128xi32>
    %c15_i32 = arith.constant 15 : i32
    %151 = vector.broadcast %c15_i32 : i32 to vector<8x128xi32>
    %152 = arith.cmpi slt, %150, %151 : vector<8x128xi32>
    %cst_28 = arith.constant -1.000000e+30 : f32
    %153 = vector.broadcast %cst_28 : f32 to vector<8x128xf32>
    %154 = arith.select %152, %149, %153 : vector<8x128xi1>, vector<8x128xf32>
    %cst_29 = arith.constant dense<0xFF800000> : vector<8xf32>
    %155 = vector.multi_reduction <maximumf>, %154, %cst_29 [1] : vector<8x128xf32> to vector<8xf32>
    %156 = vector.shape_cast %155 : vector<8xf32> to vector<8x1xf32>
    %157 = vector.broadcast %156 : vector<8x1xf32> to vector<8x128xf32>
    %158 = arith.subf %154, %157 : vector<8x128xf32>
    %159 = math.exp %158 : vector<8x128xf32>
    %cst_30 = arith.constant dense<0.000000e+00> : vector<8xf32>
    %160 = vector.multi_reduction <add>, %159, %cst_30 [1] : vector<8x128xf32> to vector<8xf32>
    %161 = vector.shape_cast %160 : vector<8xf32> to vector<8x1xf32>
    %162 = math.log %161 : vector<8x1xf32>
    %163 = arith.addf %162, %156 : vector<8x1xf32>
    %164 = vector.broadcast %163 : vector<8x1xf32> to vector<8x128xf32>
    %165 = arith.subf %149, %164 : vector<8x128xf32>
    %166 = arith.select %152, %165, %149 : vector<8x128xi1>, vector<8x128xf32>
    %c0_31 = arith.constant 0 : index
    %c0_32 = arith.constant 0 : index
    %167 = vector.load %arg2[%c0_31, %c0_32] : memref<8x128xf32, #tpu.memory_space<vmem>>, vector<8x128xf32>
    tpu.vector_store %arg2[%c0_31, %c0_32], %166 {strides = array<i32>} : memref<8x128xf32, #tpu.memory_space<vmem>>, vector<8x128xf32>,
    return
  }
}

</mosaic_0001>

<llo_original>
// kernel: erpp_forward.1
$region0: #{erpp_forward.1}
  #allocation0 [shape = 'u32[]', space=smem, size = 0x4, offset = 0x4, fixed_abs, tag = 'smem constant byte address 0x4 - core index']
  #allocation1 [shape = 'u32[144,128]{1,0:T(1,128)}', space=vmem, size = 0x12000, scoped, tag = 'internal scratch']
  %s0 = inlined_call_operand.vmem [shape: f32[56,2], index: 0, kind: input, shape index: {}]
  %s1 = inlined_call_operand.vmem [shape: f32[232,128], index: 1, kind: input, shape index: {}]
  %s2 = inlined_call_operand.vmem [shape: f32[8,128], index: 2, kind: output, shape index: {}]
  %s3 = sld [smem:[#allocation0]]
  $region18: #{erpp_forward.1} parent=0
    _
  %s5 = ssub.s32 1, %s3
  %s6 = scalar_select 0, %s5, %s3
  // Predicated region
  $region2: #{erpp_forward.1} parent=0 // pred_check
    _
  $region3: #{erpp_forward.1} parent=0 // pred_check_branch
    %8 = sbr.rel (0) target = $region5
  $region4: #{erpp_forward.1} parent=0 // pred_region
    _
  $region5: #{erpp_forward.1} parent=0 // pred_fallthru
    _
  // Predicated region
  $region6: #{erpp_forward.1} parent=0 // pred_check
    _
  $region7: #{erpp_forward.1} parent=0 // pred_check_branch
    %10 = sbr.rel (0) target = $region9
  $region8: #{erpp_forward.1} parent=0 // pred_region
    _
  $region9: #{erpp_forward.1} parent=0 // pred_fallthru
    _
  %v11 = vld [vmem:[%s1] sm:$0xff]
  %v12 = vld [vmem:[%s1 + $0x8] sm:$0xff]
  %v13 = vld [vmem:[%s1 + $0x10] sm:$0xff]
  %v14 = vld [vmem:[%s1 + $0x18] sm:$0xff]
  %v15 = vld [vmem:[%s1 + $0x20] sm:$0xff]
  %v16 = vld [vmem:[%s1 + $0x28] sm:$0xff]
  %v17 = vld [vmem:[%s1 + $0x30] sm:$0x1]
  %v18 = vld [vmem:[%s1 + $0x38] sm:$0xff]
  %v19 = vld [vmem:[%s1 + $0x40] sm:$0xff]
  %v20 = vld [vmem:[%s1 + $0x48] sm:$0xff]
  %v21 = vld [vmem:[%s1 + $0x50] sm:$0xff]
  %v22 = vld [vmem:[%s1 + $0x58] sm:$0x1]
  %v23 = vld [vmem:[%s1 + $0x60] sm:$0xff]
  %v24 = vld [vmem:[%s1 + $0x68] sm:$0xff]
  %v25 = vld [vmem:[%s1 + $0x70] sm:$0xff]
  %v26 = vld [vmem:[%s1 + $0x78] sm:$0xff]
  %v27 = vld [vmem:[%s1 + $0x80] sm:$0xff]
  %v28 = vld [vmem:[%s1 + $0x88] sm:$0xff]
  %v29 = vld [vmem:[%s1 + $0x90] sm:$0xff]
  %v30 = vld [vmem:[%s1 + $0x98] sm:$0xff]
  %v31 = vld [vmem:[%s1 + $0xa0] sm:$0xff]
  %v32 = vld [vmem:[%s1 + $0xa8] sm:$0xff]
  %v33 = vld [vmem:[%s1 + $0xb0] sm:$0xff]
  %v34 = vld [vmem:[%s1 + $0xb8] sm:$0xff]
  %v35 = vld [vmem:[%s1 + $0xc0] sm:$0xff]
  %v36 = vld [vmem:[%s1 + $0xc8] sm:$0xff]
  %v37 = vld [vmem:[%s1 + $0xd0] sm:$0xff]
  %v38 = vld [vmem:[%s1 + $0xd8] sm:$0xff]
  %v39 = vld [vmem:[%s1 + $0xe0] sm:$0x1]
  %v40 = vld [vmem:[%s0] sm:$0xff]
  %v41 = vld [vmem:[%s0 + $0x8] sm:$0xff]
  %v42 = vld [vmem:[%s0 + $0x10] sm:$0xff]
  %v43 = vld [vmem:[%s0 + $0x18] sm:$0xff]
  %v44 = vld [vmem:[%s0 + $0x20] sm:$0xff]
  %v45 = vld [vmem:[%s0 + $0x28] sm:$0xff]
  %v46 = vcvt.f32.s32.to.zero.pseudo %v40
  %v47 = vcvt.f32.s32.to.zero.pseudo %v41
  %v48 = vcvt.f32.s32.to.zero.pseudo %v42
  %v49 = vcvt.f32.s32.to.zero.pseudo %v43
  %v50 = vcvt.f32.s32.to.zero.pseudo %v44
  %v51 = vcvt.f32.s32.to.zero.pseudo %v45
  %v52 = vlaneseq
  %v53 = vand.u32 %v52, 127
  %vm54 = vcmp.eq.s32.totalorder %v53, 0
  %v55 = vadd.s32 %v46, 1
  %v56 = vadd.s32 %v47, 1
  %v57 = vadd.s32 %v48, 1
  %v58 = vadd.s32 %v49, 1
  %v59 = vadd.s32 %v50, 1
  %v60 = vadd.s32 %v51, 1
  %61 = vset.pattern.permute.xlu0 1
  %62 = vperm.xlu0 %61, %v55
  %v63 = vpop.permute.xlu0 %62
  %64 = vset.pattern.permute.xlu0 1
  %65 = vperm.xlu0 %64, %v56
  %v66 = vpop.permute.xlu0 %65
  %67 = vset.pattern.permute.xlu0 1
  %68 = vperm.xlu0 %67, %v57
  %v69 = vpop.permute.xlu0 %68
  %70 = vset.pattern.permute.xlu0 1
  %71 = vperm.xlu0 %70, %v58
  %v72 = vpop.permute.xlu0 %71
  %73 = vset.pattern.permute.xlu0 1
  %74 = vperm.xlu0 %73, %v59
  %v75 = vpop.permute.xlu0 %74
  %76 = vset.pattern.permute.xlu0 1
  %77 = vperm.xlu0 %76, %v60
  %v78 = vpop.permute.xlu0 %77
  %vm79 = vcmp.eq.s32.totalorder %v63, %v53
  %vm80 = vcmp.eq.s32.totalorder %v66, %v53
  %vm81 = vcmp.eq.s32.totalorder %v69, %v53
  %vm82 = vcmp.eq.s32.totalorder %v72, %v53
  %vm83 = vcmp.eq.s32.totalorder %v75, %v53
  %vm84 = vcmp.eq.s32.totalorder %v78, %v53
  %v85 = vsel %vm79, 1, 0
  %v86 = vsel %vm80, 1, 0
  %v87 = vsel %vm81, 1, 0
  %v88 = vsel %vm82, 1, 0
  %v89 = vsel %vm83, 1, 0
  %v90 = vsel %vm84, 1, 0
  %v91 = vcvt.s32.f32 %v85
  %v92 = vcvt.s32.f32 %v86
  %v93 = vcvt.s32.f32 %v87
  %v94 = vcvt.s32.f32 %v88
  %v95 = vcvt.s32.f32 %v89
  %v96 = vcvt.s32.f32 %v90
  %98 = vset.pattern.permute.xlu0 0
  %99 = vperm.xlu0 %98, %v40
  %v100 = vpop.permute.xlu0 %99
  %103 = vset.pattern.permute.xlu0 0
  %104 = vperm.xlu0 %103, %v41
  %v105 = vpop.permute.xlu0 %104
  %108 = vset.pattern.permute.xlu0 0
  %109 = vperm.xlu0 %108, %v42
  %v110 = vpop.permute.xlu0 %109
  %113 = vset.pattern.permute.xlu0 0
  %114 = vperm.xlu0 %113, %v43
  %v115 = vpop.permute.xlu0 %114
  %118 = vset.pattern.permute.xlu0 0
  %119 = vperm.xlu0 %118, %v44
  %v120 = vpop.permute.xlu0 %119
  %123 = vset.pattern.permute.xlu0 0
  %124 = vperm.xlu0 %123, %v45
  %v125 = vpop.permute.xlu0 %124
  %v127 = vsel %vm54, %v100, %v91
  %v128 = vsel %vm54, %v105, %v92
  %v129 = vsel %vm54, %v110, %v93
  %v130 = vsel %vm54, %v115, %v94
  %v131 = vsel %vm54, %v120, %v95
  %v132 = vsel %vm54, %v125, %v96
  %v133 = vlaneseq
  %v134 = vshrl.u32 %v133, 7
  %v135 = vsub.s32 0, %v134
  %v136 = vrot.slane %v17, %v135
  %vm137 = vcmask 130048
  %v139 = vsel %vm137, %v127, 0
  %v142 = vsel %vm137, %v128, 0
  %v145 = vsel %vm137, %v129, 0
  %v148 = vsel %vm137, %v130, 0
  %v151 = vsel %vm137, %v131, 0
  %v154 = vsel %vm137, %v132, 0
  %156 = vmatprep.subr.mxu0 0.0
  %157 = vmatpush1.msra.mxu0 %v11
  %158 = vmatprep.subr.mxu0 0.0
  %159 = vmatpush1.msra.mxu0 %v12
  %160 = vmatprep.subr.mxu0 0.0
  %161 = vmatpush1.msra.mxu0 0.0
  %162 = vmatprep.subr.mxu0 0.0
  %163 = vmatpush1.msra.mxu0 0.0
  %164 = vmatprep.subr.mxu0 0.0
  %165 = vmatpush1.msra.mxu0 0.0
  %166 = vmatprep.subr.mxu0 0.0
  %167 = vmatpush1.msra.mxu0 0.0
  %168 = vmatprep.subr.mxu0 0.0
  %169 = vmatpush1.msra.mxu0 0.0
  %170 = vmatprep.subr.mxu0 0.0
  %171 = vmatpush1.msra.mxu0 0.0
  %172 = vmatprep.subr.mxu0 0.0
  %173 = vmatpush1.msra.mxu0 0.0
  %174 = vmatprep.subr.mxu0 0.0
  %175 = vmatpush1.msra.mxu0 0.0
  %176 = vmatprep.subr.mxu0 0.0
  %177 = vmatpush1.msra.mxu0 0.0
  %178 = vmatprep.subr.mxu0 0.0
  %179 = vmatpush1.msra.mxu0 0.0
  %180 = vmatprep.subr.mxu0 0.0
  %181 = vmatpush1.msra.mxu0 0.0
  %182 = vmatprep.subr.mxu0 0.0
  %183 = vmatpush1.msra.mxu0 0.0
  %184 = vmatprep.subr.mxu0 0.0
  %185 = vmatpush1.msra.mxu0 0.0
  %186 = vmatprep.subr.mxu0 0.0
  %187 = vmatpush1.msra.mxu0 0.0
  %188 = vmatprep.subr.mxu0 0.0
  %189 = vmatpush1.msra.mxu0 0.0
  %190 = vmatprep.subr.mxu0 0.0
  %191 = vmatpush1.msra.mxu0 0.0
  %192 = vmatprep.subr.mxu0 0.0
  %193 = vmatpush1.msra.mxu0 0.0
  %194 = vmatprep.subr.mxu0 0.0
  %195 = vmatpush1.msra.mxu0 0.0
  %196 = vmatprep.subr.mxu0 0.0
  %197 = vmatpush1.msra.mxu0 0.0
  %198 = vmatprep.subr.mxu0 0.0
  %199 = vmatpush1.msra.mxu0 0.0
  %200 = vmatprep.subr.mxu0 0.0
  %201 = vmatpush1.msra.mxu0 0.0
  %202 = vmatprep.subr.mxu0 0.0
  %203 = vmatpush1.msra.mxu0 0.0
  %204 = vmatprep.subr.mxu0 0.0
  %205 = vmatpush1.msra.mxu0 0.0
  %206 = vmatprep.subr.mxu0 0.0
  %207 = vmatpush1.msra.mxu0 0.0
  %208 = vmatprep.subr.mxu0 0.0
  %209 = vmatpush1.msra.mxu0 0.0
  %210 = vmatprep.subr.mxu0 0.0
  %211 = vmatpush1.msra.mxu0 0.0
  %212 = vmatprep.subr.mxu0 0.0
  %213 = vmatpush1.msra.mxu0 0.0
  %214 = vmatprep.subr.mxu0 0.0
  %215 = vmatpush1.msra.mxu0 0.0
  %216 = vmatprep.subr.mxu0 0.0
  %217 = vmatpush1.msra.mxu0 0.0
  %218 = vmatprep.subr.mxu0 0.0
  %219 = vmatpush1.msra.mxu0 0.0
  %220 = vmatprep.mubr.f32.mxu0 0.0
  %221 = vmatmul.mubr.f32.gmra.mrb[0].mxu0 %v139
  %v222 = vpop.f32.mrb[0].mxu0
  %v223 = vadd.f32 %v136, %v222
  %v224 = vpop.f32.mrb[0].mxu0
  %225 = vmatprep.mubr.f32.mxu0 0.0
  %226 = vmatmul.mubr.f32.gmra.mrb[0].mxu0 %v142
  %v227 = vpop.f32.mrb[0].mxu0
  %v228 = vadd.f32 %v136, %v227
  %v229 = vpop.f32.mrb[0].mxu0
  %230 = vmatprep.mubr.f32.mxu0 0.0
  %231 = vmatmul.mubr.f32.gmra.mrb[0].mxu0 %v145
  %v232 = vpop.f32.mrb[0].mxu0
  %v233 = vadd.f32 %v136, %v232
  %v234 = vpop.f32.mrb[0].mxu0
  %235 = vmatprep.mubr.f32.mxu0 0.0
  %236 = vmatmul.mubr.f32.gmra.mrb[0].mxu0 %v148
  %v237 = vpop.f32.mrb[0].mxu0
  %v238 = vadd.f32 %v136, %v237
  %v239 = vpop.f32.mrb[0].mxu0
  %240 = vmatprep.mubr.f32.mxu0 0.0
  %241 = vmatmul.mubr.f32.gmra.mrb[0].mxu0 %v151
  %v242 = vpop.f32.mrb[0].mxu0
  %v243 = vadd.f32 %v136, %v242
  %v244 = vpop.f32.mrb[0].mxu0
  %245 = vmatprep.mubr.f32.mxu0 0.0
  %246 = vmatmul.mubr.f32.gmra.mrb[0].mxu0 %v154
  %v247 = vpop.f32.mrb[0].mxu0
  %v248 = vadd.f32 %v136, %v247
  %v249 = vpop.f32.mrb[0].mxu0
  %250 = vdwg.mxu0
  %vm251 = vcmask 261120
  %v253 = vsel %vm251, 0.0, 0
  %255 = vmatprep.subr.mxu0 0.0
  %256 = vmatpush1.msra.mxu0 %v13
  %257 = vmatprep.subr.mxu0 0.0
  %258 = vmatpush1.msra.mxu0 %v14
  %259 = vmatprep.subr.mxu0 0.0
  %260 = vmatpush1.msra.mxu0 %v15
  %261 = vmatprep.subr.mxu0 0.0
  %262 = vmatpush1.msra.mxu0 %v16
  %263 = vmatprep.subr.mxu0 0.0
  %264 = vmatpush1.msra.mxu0 0.0
  %265 = vmatprep.subr.mxu0 0.0
  %266 = vmatpush1.msra.mxu0 0.0
  %267 = vmatprep.subr.mxu0 0.0
  %268 = vmatpush1.msra.mxu0 0.0
  %269 = vmatprep.subr.mxu0 0.0
  %270 = vmatpush1.msra.mxu0 0.0
  %271 = vmatprep.subr.mxu0 0.0
  %272 = vmatpush1.msra.mxu0 0.0
  %273 = vmatprep.subr.mxu0 0.0
  %274 = vmatpush1.msra.mxu0 0.0
  %275 = vmatprep.subr.mxu0 0.0
  %276 = vmatpush1.msra.mxu0 0.0
  %277 = vmatprep.subr.mxu0 0.0
  %278 = vmatpush1.msra.mxu0 0.0
  %279 = vmatprep.subr.mxu0 0.0
  %280 = vmatpush1.msra.mxu0 0.0
  %281 = vmatprep.subr.mxu0 0.0
  %282 = vmatpush1.msra.mxu0 0.0
  %283 = vmatprep.subr.mxu0 0.0
  %284 = vmatpush1.msra.mxu0 0.0
  %285 = vmatprep.subr.mxu0 0.0
  %286 = vmatpush1.msra.mxu0 0.0
  %287 = vmatprep.subr.mxu0 0.0
  %288 = vmatpush1.msra.mxu0 0.0
  %289 = vmatprep.subr.mxu0 0.0
  %290 = vmatpush1.msra.mxu0 0.0
  %291 = vmatprep.subr.mxu0 0.0
  %292 = vmatpush1.msra.mxu0 0.0
  %293 = vmatprep.subr.mxu0 0.0
  %294 = vmatpush1.msra.mxu0 0.0
  %295 = vmatprep.subr.mxu0 0.0
  %296 = vmatpush1.msra.mxu0 0.0
  %297 = vmatprep.subr.mxu0 0.0
  %298 = vmatpush1.msra.mxu0 0.0
  %299 = vmatprep.subr.mxu0 0.0
  %300 = vmatpush1.msra.mxu0 0.0
  %301 = vmatprep.subr.mxu0 0.0
  %302 = vmatpush1.msra.mxu0 0.0
  %303 = vmatprep.subr.mxu0 0.0
  %304 = vmatpush1.msra.mxu0 0.0
  %305 = vmatprep.subr.mxu0 0.0
  %306 = vmatpush1.msra.mxu0 0.0
  %307 = vmatprep.subr.mxu0 0.0
  %308 = vmatpush1.msra.mxu0 0.0
  %309 = vmatprep.subr.mxu0 0.0
  %310 = vmatpush1.msra.mxu0 0.0
  %311 = vmatprep.subr.mxu0 0.0
  %312 = vmatpush1.msra.mxu0 0.0
  %313 = vmatprep.subr.mxu0 0.0
  %314 = vmatpush1.msra.mxu0 0.0
  %315 = vmatprep.subr.mxu0 0.0
  %316 = vmatpush1.msra.mxu0 0.0
  %317 = vmatprep.subr.mxu0 0.0
  %318 = vmatpush1.msra.mxu0 0.0
  %319 = vmatprep.mubr.f32.mxu0 0.0
  %320 = vmatmul.mubr.f32.gmra.mrb[0].mxu0 %v253
  %v321 = vpop.f32.mrb[0].mxu0
  %v322 = vadd.f32 0.0, %v321
  %v323 = vpop.f32.mrb[0].mxu0
  %324 = vdwg.mxu0
  %v325 = vadd.f32 %v223, %v322
  %v326 = vxor.u32 %v325, 2147483648
  %v327 = vmul.f32 %v326, 1.442695
  %v328 = vpow.pop %v327
  %v329 = vadd.f32 %v328, 1.0
  %v330 = vrcp.pop %v329
  %v331 = vmul.f32 1.0, %v330
  %v332 = vtanh.pop %v325
  %v333 = vmul.f32 %v331, 0.0
  %335 = vrot.lane.b32.xlu0 %v332, 64
  %v336 = vpop.permute.xlu0 %335
  %v338 = vmul.f32 %v331, %v336
  %340 = vrot.lane.b32.xlu0 %v338, 32
  %v341 = vpop.permute.xlu0 %340
  %v343 = vadd.f32 %v333, %v341
  %v344 = vtanh.pop %v343
  %346 = vrot.lane.b32.xlu0 %v344, 64
  %v347 = vpop.permute.xlu0 %346
  %v349 = vmul.f32 %v331, %v347
  %351 = vrot.lane.b32.xlu0 %v349, 32
  %v352 = vpop.permute.xlu0 %351
  %v353 = vsel %vm251, %v352, 0
  %355 = vmatprep.subr.mxu0 0.0
  %356 = vmatpush1.msra.mxu0 %v13
  %357 = vmatprep.subr.mxu0 0.0
  %358 = vmatpush1.msra.mxu0 %v14
  %359 = vmatprep.subr.mxu0 0.0
  %360 = vmatpush1.msra.mxu0 %v15
  %361 = vmatprep.subr.mxu0 0.0
  %362 = vmatpush1.msra.mxu0 %v16
  %363 = vmatprep.subr.mxu0 0.0
  %364 = vmatpush1.msra.mxu0 0.0
  %365 = vmatprep.subr.mxu0 0.0
  %366 = vmatpush1.msra.mxu0 0.0
  %367 = vmatprep.subr.mxu0 0.0
  %368 = vmatpush1.msra.mxu0 0.0
  %369 = vmatprep.subr.mxu0 0.0
  %370 = vmatpush1.msra.mxu0 0.0
  %371 = vmatprep.subr.mxu0 0.0
  %372 = vmatpush1.msra.mxu0 0.0
  %373 = vmatprep.subr.mxu0 0.0
  %374 = vmatpush1.msra.mxu0 0.0
  %375 = vmatprep.subr.mxu0 0.0
  %376 = vmatpush1.msra.mxu0 0.0
  %377 = vmatprep.subr.mxu0 0.0
  %378 = vmatpush1.msra.mxu0 0.0
  %379 = vmatprep.subr.mxu0 0.0
  %380 = vmatpush1.msra.mxu0 0.0
  %381 = vmatprep.subr.mxu0 0.0
  %382 = vmatpush1.msra.mxu0 0.0
  %383 = vmatprep.subr.mxu0 0.0
  %384 = vmatpush1.msra.mxu0 0.0
  %385 = vmatprep.subr.mxu0 0.0
  %386 = vmatpush1.msra.mxu0 0.0
  %387 = vmatprep.subr.mxu0 0.0
  %388 = vmatpush1.msra.mxu0 0.0
  %389 = vmatprep.subr.mxu0 0.0
  %390 = vmatpush1.msra.mxu0 0.0
  %391 = vmatprep.subr.mxu0 0.0
  %392 = vmatpush1.msra.mxu0 0.0
  %393 = vmatprep.subr.mxu0 0.0
  %394 = vmatpush1.msra.mxu0 0.0
  %395 = vmatprep.subr.mxu0 0.0
  %396 = vmatpush1.msra.mxu0 0.0
  %397 = vmatprep.subr.mxu0 0.0
  %398 = vmatpush1.msra.mxu0 0.0
  %399 = vmatprep.subr.mxu0 0.0
  %400 = vmatpush1.msra.mxu0 0.0
  %401 = vmatprep.subr.mxu0 0.0
  %402 = vmatpush1.msra.mxu0 0.0
  %403 = vmatprep.subr.mxu0 0.0
  %404 = vmatpush1.msra.mxu0 0.0
  %405 = vmatprep.subr.mxu0 0.0
  %406 = vmatpush1.msra.mxu0 0.0
  %407 = vmatprep.subr.mxu0 0.0
  %408 = vmatpush1.msra.mxu0 0.0
  %409 = vmatprep.subr.mxu0 0.0
  %410 = vmatpush1.msra.mxu0 0.0
  %411 = vmatprep.subr.mxu0 0.0
  %412 = vmatpush1.msra.mxu0 0.0
  %413 = vmatprep.subr.mxu0 0.0
  %414 = vmatpush1.msra.mxu0 0.0
  %415 = vmatprep.subr.mxu0 0.0
  %416 = vmatpush1.msra.mxu0 0.0
  %417 = vmatprep.subr.mxu0 0.0
  %418 = vmatpush1.msra.mxu0 0.0
  %419 = vmatprep.mubr.f32.mxu0 0.0
  %420 = vmatmul.mubr.f32.gmra.mrb[0].mxu0 %v353
  %v421 = vpop.f32.mrb[0].mxu0
  %v422 = vadd.f32 0.0, %v421
  %v423 = vpop.f32.mrb[0].mxu0
  %424 = vdwg.mxu0
  %v425 = vadd.f32 %v228, %v422
  %v426 = vxor.u32 %v425, 2147483648
  %v427 = vmul.f32 %v426, 1.442695
  %v428 = vpow.pop %v427
  %v429 = vadd.f32 %v428, 1.0
  %v430 = vrcp.pop %v429
  %v431 = vmul.f32 1.0, %v430
  %v432 = vtanh.pop %v425
  %v433 = vmul.f32 %v431, %v343
  %435 = vrot.lane.b32.xlu0 %v432, 64
  %v436 = vpop.permute.xlu0 %435
  %v438 = vmul.f32 %v431, %v436
  %440 = vrot.lane.b32.xlu0 %v438, 32
  %v441 = vpop.permute.xlu0 %440
  %v443 = vadd.f32 %v433, %v441
  %v444 = vtanh.pop %v443
  %446 = vrot.lane.b32.xlu0 %v444, 64
  %v447 = vpop.permute.xlu0 %446
  %v449 = vmul.f32 %v431, %v447
  %451 = vrot.lane.b32.xlu0 %v449, 32
  %v452 = vpop.permute.xlu0 %451
  %v453 = vsel %vm251, %v452, 0
  %455 = vmatprep.subr.mxu0 0.0
  %456 = vmatpush1.msra.mxu0 %v13
  %457 = vmatprep.subr.mxu0 0.0
  %458 = vmatpush1.msra.mxu0 %v14
  %459 = vmatprep.subr.mxu0 0.0
  %460 = vmatpush1.msra.mxu0 %v15
  %461 = vmatprep.subr.mxu0 0.0
  %462 = vmatpush1.msra.mxu0 %v16
  %463 = vmatprep.subr.mxu0 0.0
  %464 = vmatpush1.msra.mxu0 0.0
  %465 = vmatprep.subr.mxu0 0.0
  %466 = vmatpush1.msra.mxu0 0.0
  %467 = vmatprep.subr.mxu0 0.0
  %468 = vmatpush1.msra.mxu0 0.0
  %469 = vmatprep.subr.mxu0 0.0
  %470 = vmatpush1.msra.mxu0 0.0
  %471 = vmatprep.subr.mxu0 0.0
  %472 = vmatpush1.msra.mxu0 0.0
  %473 = vmatprep.subr.mxu0 0.0
  %474 = vmatpush1.msra.mxu0 0.0
  %475 = vmatprep.subr.mxu0 0.0
  %476 = vmatpush1.msra.mxu0 0.0
  %477 = vmatprep.subr.mxu0 0.0
  %478 = vmatpush1.msra.mxu0 0.0
  %479 = vmatprep.subr.mxu0 0.0
  %480 = vmatpush1.msra.mxu0 0.0
  %481 = vmatprep.subr.mxu0 0.0
  %482 = vmatpush1.msra.mxu0 0.0
  %483 = vmatprep.subr.mxu0 0.0
  %484 = vmatpush1.msra.mxu0 0.0
  %485 = vmatprep.subr.mxu0 0.0
  %486 = vmatpush1.msra.mxu0 0.0
  %487 = vmatprep.subr.mxu0 0.0
  %488 = vmatpush1.msra.mxu0 0.0
  %489 = vmatprep.subr.mxu0 0.0
  %490 = vmatpush1.msra.mxu0 0.0
  %491 = vmatprep.subr.mxu0 0.0
  %492 = vmatpush1.msra.mxu0 0.0
  %493 = vmatprep.subr.mxu0 0.0
  %494 = vmatpush1.msra.mxu0 0.0
  %495 = vmatprep.subr.mxu0 0.0
  %496 = vmatpush1.msra.mxu0 0.0
  %497 = vmatprep.subr.mxu0 0.0
  %498 = vmatpush1.msra.mxu0 0.0
  %499 = vmatprep.subr.mxu0 0.0
  %500 = vmatpush1.msra.mxu0 0.0
  %501 = vmatprep.subr.mxu0 0.0
  %502 = vmatpush1.msra.mxu0 0.0
  %503 = vmatprep.subr.mxu0 0.0
  %504 = vmatpush1.msra.mxu0 0.0
  %505 = vmatprep.subr.mxu0 0.0
  %506 = vmatpush1.msra.mxu0 0.0
  %507 = vmatprep.subr.mxu0 0.0
  %508 = vmatpush1.msra.mxu0 0.0
  %509 = vmatprep.subr.mxu0 0.0
  %510 = vmatpush1.msra.mxu0 0.0
  %511 = vmatprep.subr.mxu0 0.0
  %512 = vmatpush1.msra.mxu0 0.0
  %513 = vmatprep.subr.mxu0 0.0
  %514 = vmatpush1.msra.mxu0 0.0
  %515 = vmatprep.subr.mxu0 0.0
  %516 = vmatpush1.msra.mxu0 0.0
  %517 = vmatprep.subr.mxu0 0.0
  %518 = vmatpush1.msra.mxu0 0.0
  %519 = vmatprep.mubr.f32.mxu0 0.0
  %520 = vmatmul.mubr.f32.gmra.mrb[0].mxu0 %v453
  %v521 = vpop.f32.mrb[0].mxu0
  %v522 = vadd.f32 0.0, %v521
  %v523 = vpop.f32.mrb[0].mxu0
  %524 = vdwg.mxu0
  %v525 = vadd.f32 %v233, %v522
  %v526 = vxor.u32 %v525, 2147483648
  %v527 = vmul.f32 %v526, 1.442695
  %v528 = vpow.pop %v527
  %v529 = vadd.f32 %v528, 1.0
  %v530 = vrcp.pop %v529
  %v531 = vmul.f32 1.0, %v530
  %v532 = vtanh.pop %v525
  %v533 = vmul.f32 %v531, %v443
  %535 = vrot.lane.b32.xlu0 %v532, 64
  %v536 = vpop.permute.xlu0 %535
  %v538 = vmul.f32 %v531, %v536
  %540 = vrot.lane.b32.xlu0 %v538, 32
  %v541 = vpop.permute.xlu0 %540
  %v543 = vadd.f32 %v533, %v541
  %v544 = vtanh.pop %v543
  %546 = vrot.lane.b32.xlu0 %v544, 64
  %v547 = vpop.permute.xlu0 %546
  %v549 = vmul.f32 %v531, %v547
  %551 = vrot.lane.b32.xlu0 %v549, 32
  %v552 = vpop.permute.xlu0 %551
  %v553 = vsel %vm251, %v552, 0
  %555 = vmatprep.subr.mxu0 0.0
  %556 = vmatpush1.msra.mxu0 %v13
  %557 = vmatprep.subr.mxu0 0.0
  %558 = vmatpush1.msra.mxu0 %v14
  %559 = vmatprep.subr.mxu0 0.0
  %560 = vmatpush1.msra.mxu0 %v15
  %561 = vmatprep.subr.mxu0 0.0
  %562 = vmatpush1.msra.mxu0 %v16
  %563 = vmatprep.subr.mxu0 0.0
  %564 = vmatpush1.msra.mxu0 0.0
  %565 = vmatprep.subr.mxu0 0.0
  %566 = vmatpush1.msra.mxu0 0.0
  %567 = vmatprep.subr.mxu0 0.0
  %568 = vmatpush1.msra.mxu0 0.0
  %569 = vmatprep.subr.mxu0 0.0
  %570 = vmatpush1.msra.mxu0 0.0
  %571 = vmatprep.subr.mxu0 0.0
  %572 = vmatpush1.msra.mxu0 0.0
  %573 = vmatprep.subr.mxu0 0.0
  %574 = vmatpush1.msra.mxu0 0.0
  %575 = vmatprep.subr.mxu0 0.0
  %576 = vmatpush1.msra.mxu0 0.0
  %577 = vmatprep.subr.mxu0 0.0
  %578 = vmatpush1.msra.mxu0 0.0
  %579 = vmatprep.subr.mxu0 0.0
  %580 = vmatpush1.msra.mxu0 0.0
  %581 = vmatprep.subr.mxu0 0.0
  %582 = vmatpush1.msra.mxu0 0.0
  %583 = vmatprep.subr.mxu0 0.0
  %584 = vmatpush1.msra.mxu0 0.0
  %585 = vmatprep.subr.mxu0 0.0
  %586 = vmatpush1.msra.mxu0 0.0
  %587 = vmatprep.subr.mxu0 0.0
  %588 = vmatpush1.msra.mxu0 0.0
  %589 = vmatprep.subr.mxu0 0.0
  %590 = vmatpush1.msra.mxu0 0.0
  %591 = vmatprep.subr.mxu0 0.0
  %592 = vmatpush1.msra.mxu0 0.0
  %593 = vmatprep.subr.mxu0 0.0
  %594 = vmatpush1.msra.mxu0 0.0
  %595 = vmatprep.subr.mxu0 0.0
  %596 = vmatpush1.msra.mxu0 0.0
  %597 = vmatprep.subr.mxu0 0.0
  %598 = vmatpush1.msra.mxu0 0.0
  %599 = vmatprep.subr.mxu0 0.0
  %600 = vmatpush1.msra.mxu0 0.0
  %601 = vmatprep.subr.mxu0 0.0
  %602 = vmatpush1.msra.mxu0 0.0
  %603 = vmatprep.subr.mxu0 0.0
  %604 = vmatpush1.msra.mxu0 0.0
  %605 = vmatprep.subr.mxu0 0.0
  %606 = vmatpush1.msra.mxu0 0.0
  %607 = vmatprep.subr.mxu0 0.0
  %608 = vmatpush1.msra.mxu0 0.0
  %609 = vmatprep.subr.mxu0 0.0
  %610 = vmatpush1.msra.mxu0 0.0
  %611 = vmatprep.subr.mxu0 0.0
  %612 = vmatpush1.msra.mxu0 0.0
  %613 = vmatprep.subr.mxu0 0.0
  %614 = vmatpush1.msra.mxu0 0.0
  %615 = vmatprep.subr.mxu0 0.0
  %616 = vmatpush1.msra.mxu0 0.0
  %617 = vmatprep.subr.mxu0 0.0
  %618 = vmatpush1.msra.mxu0 0.0
  %619 = vmatprep.mubr.f32.mxu0 0.0
  %620 = vmatmul.mubr.f32.gmra.mrb[0].mxu0 %v553
  %v621 = vpop.f32.mrb[0].mxu0
  %v622 = vadd.f32 0.0, %v621
  %v623 = vpop.f32.mrb[0].mxu0
  %624 = vdwg.mxu0
  %v625 = vadd.f32 %v238, %v622
  %v626 = vxor.u32 %v625, 2147483648
  %v627 = vmul.f32 %v626, 1.442695
  %v628 = vpow.pop %v627
  %v629 = vadd.f32 %v628, 1.0
  %v630 = vrcp.pop %v629
  %v631 = vmul.f32 1.0, %v630
  %v632 = vtanh.pop %v625
  %v633 = vmul.f32 %v631, %v543
  %635 = vrot.lane.b32.xlu0 %v632, 64
  %v636 = vpop.permute.xlu0 %635
  %v638 = vmul.f32 %v631, %v636
  %640 = vrot.lane.b32.xlu0 %v638, 32
  %v641 = vpop.permute.xlu0 %640
  %v643 = vadd.f32 %v633, %v641
  %v644 = vtanh.pop %v643
  %646 = vrot.lane.b32.xlu0 %v644, 64
  %v647 = vpop.permute.xlu0 %646
  %v649 = vmul.f32 %v631, %v647
  %651 = vrot.lane.b32.xlu0 %v649, 32
  %v652 = vpop.permute.xlu0 %651
  %v653 = vsel %vm251, %v652, 0
  %655 = vmatprep.subr.mxu0 0.0
  %656 = vmatpush1.msra.mxu0 %v13
  %657 = vmatprep.subr.mxu0 0.0
  %658 = vmatpush1.msra.mxu0 %v14
  %659 = vmatprep.subr.mxu0 0.0
  %660 = vmatpush1.msra.mxu0 %v15
  %661 = vmatprep.subr.mxu0 0.0
  %662 = vmatpush1.msra.mxu0 %v16
  %663 = vmatprep.subr.mxu0 0.0
  %664 = vmatpush1.msra.mxu0 0.0
  %665 = vmatprep.subr.mxu0 0.0
  %666 = vmatpush1.msra.mxu0 0.0
  %667 = vmatprep.subr.mxu0 0.0
  %668 = vmatpush1.msra.mxu0 0.0
  %669 = vmatprep.subr.mxu0 0.0
  %670 = vmatpush1.msra.mxu0 0.0
  %671 = vmatprep.subr.mxu0 0.0
  %672 = vmatpush1.msra.mxu0 0.0
  %673 = vmatprep.subr.mxu0 0.0
  %674 = vmatpush1.msra.mxu0 0.0
  %675 = vmatprep.subr.mxu0 0.0
  %676 = vmatpush1.msra.mxu0 0.0
  %677 = vmatprep.subr.mxu0 0.0
  %678 = vmatpush1.msra.mxu0 0.0
  %679 = vmatprep.subr.mxu0 0.0
  %680 = vmatpush1.msra.mxu0 0.0
  %681 = vmatprep.subr.mxu0 0.0
  %682 = vmatpush1.msra.mxu0 0.0
  %683 = vmatprep.subr.mxu0 0.0
  %684 = vmatpush1.msra.mxu0 0.0
  %685 = vmatprep.subr.mxu0 0.0
  %686 = vmatpush1.msra.mxu0 0.0
  %687 = vmatprep.subr.mxu0 0.0
  %688 = vmatpush1.msra.mxu0 0.0
  %689 = vmatprep.subr.mxu0 0.0
  %690 = vmatpush1.msra.mxu0 0.0
  %691 = vmatprep.subr.mxu0 0.0
  %692 = vmatpush1.msra.mxu0 0.0
  %693 = vmatprep.subr.mxu0 0.0
  %694 = vmatpush1.msra.mxu0 0.0
  %695 = vmatprep.subr.mxu0 0.0
  %696 = vmatpush1.msra.mxu0 0.0
  %697 = vmatprep.subr.mxu0 0.0
  %698 = vmatpush1.msra.mxu0 0.0
  %699 = vmatprep.subr.mxu0 0.0
  %700 = vmatpush1.msra.mxu0 0.0
  %701 = vmatprep.subr.mxu0 0.0
  %702 = vmatpush1.msra.mxu0 0.0
  %703 = vmatprep.subr.mxu0 0.0
  %704 = vmatpush1.msra.mxu0 0.0
  %705 = vmatprep.subr.mxu0 0.0
  %706 = vmatpush1.msra.mxu0 0.0
  %707 = vmatprep.subr.mxu0 0.0
  %708 = vmatpush1.msra.mxu0 0.0
  %709 = vmatprep.subr.mxu0 0.0
  %710 = vmatpush1.msra.mxu0 0.0
  %711 = vmatprep.subr.mxu0 0.0
  %712 = vmatpush1.msra.mxu0 0.0
  %713 = vmatprep.subr.mxu0 0.0
  %714 = vmatpush1.msra.mxu0 0.0
  %715 = vmatprep.subr.mxu0 0.0
  %716 = vmatpush1.msra.mxu0 0.0
  %717 = vmatprep.subr.mxu0 0.0
  %718 = vmatpush1.msra.mxu0 0.0
  %719 = vmatprep.mubr.f32.mxu0 0.0
  %720 = vmatmul.mubr.f32.gmra.mrb[0].mxu0 %v653
  %v721 = vpop.f32.mrb[0].mxu0
  %v722 = vadd.f32 0.0, %v721
  %v723 = vpop.f32.mrb[0].mxu0
  %724 = vdwg.mxu0
  %v725 = vadd.f32 %v243, %v722
  %v726 = vxor.u32 %v725, 2147483648
  %v727 = vmul.f32 %v726, 1.442695
  %v728 = vpow.pop %v727
  %v729 = vadd.f32 %v728, 1.0
  %v730 = vrcp.pop %v729
  %v731 = vmul.f32 1.0, %v730
  %v732 = vtanh.pop %v725
  %v733 = vmul.f32 %v731, %v643
  %735 = vrot.lane.b32.xlu0 %v732, 64
  %v736 = vpop.permute.xlu0 %735
  %v738 = vmul.f32 %v731, %v736
  %740 = vrot.lane.b32.xlu0 %v738, 32
  %v741 = vpop.permute.xlu0 %740
  %v743 = vadd.f32 %v733, %v741
  %v744 = vtanh.pop %v743
  %746 = vrot.lane.b32.xlu0 %v744, 64
  %v747 = vpop.permute.xlu0 %746
  %v749 = vmul.f32 %v731, %v747
  %751 = vrot.lane.b32.xlu0 %v749, 32
  %v752 = vpop.permute.xlu0 %751
  %v753 = vsel %vm251, %v752, 0
  %755 = vmatprep.subr.mxu0 0.0
  %756 = vmatpush1.msra.mxu0 %v13
  %757 = vmatprep.subr.mxu0 0.0
  %758 = vmatpush1.msra.mxu0 %v14
  %759 = vmatprep.subr.mxu0 0.0
  %760 = vmatpush1.msra.mxu0 %v15
  %761 = vmatprep.subr.mxu0 0.0
  %762 = vmatpush1.msra.mxu0 %v16
  %763 = vmatprep.subr.mxu0 0.0
  %764 = vmatpush1.msra.mxu0 0.0
  %765 = vmatprep.subr.mxu0 0.0
  %766 = vmatpush1.msra.mxu0 0.0
  %767 = vmatprep.subr.mxu0 0.0
  %768 = vmatpush1.msra.mxu0 0.0
  %769 = vmatprep.subr.mxu0 0.0
  %770 = vmatpush1.msra.mxu0 0.0
  %771 = vmatprep.subr.mxu0 0.0
  %772 = vmatpush1.msra.mxu0 0.0
  %773 = vmatprep.subr.mxu0 0.0
  %774 = vmatpush1.msra.mxu0 0.0
  %775 = vmatprep.subr.mxu0 0.0
  %776 = vmatpush1.msra.mxu0 0.0
  %777 = vmatprep.subr.mxu0 0.0
  %778 = vmatpush1.msra.mxu0 0.0
  %779 = vmatprep.subr.mxu0 0.0
  %780 = vmatpush1.msra.mxu0 0.0
  %781 = vmatprep.subr.mxu0 0.0
  %782 = vmatpush1.msra.mxu0 0.0
  %783 = vmatprep.subr.mxu0 0.0
  %784 = vmatpush1.msra.mxu0 0.0
  %785 = vmatprep.subr.mxu0 0.0
  %786 = vmatpush1.msra.mxu0 0.0
  %787 = vmatprep.subr.mxu0 0.0
  %788 = vmatpush1.msra.mxu0 0.0
  %789 = vmatprep.subr.mxu0 0.0
  %790 = vmatpush1.msra.mxu0 0.0
  %791 = vmatprep.subr.mxu0 0.0
  %792 = vmatpush1.msra.mxu0 0.0
  %793 = vmatprep.subr.mxu0 0.0
  %794 = vmatpush1.msra.mxu0 0.0
  %795 = vmatprep.subr.mxu0 0.0
  %796 = vmatpush1.msra.mxu0 0.0
  %797 = vmatprep.subr.mxu0 0.0
  %798 = vmatpush1.msra.mxu0 0.0
  %799 = vmatprep.subr.mxu0 0.0
  %800 = vmatpush1.msra.mxu0 0.0
  %801 = vmatprep.subr.mxu0 0.0
  %802 = vmatpush1.msra.mxu0 0.0
  %803 = vmatprep.subr.mxu0 0.0
  %804 = vmatpush1.msra.mxu0 0.0
  %805 = vmatprep.subr.mxu0 0.0
  %806 = vmatpush1.msra.mxu0 0.0
  %807 = vmatprep.subr.mxu0 0.0
  %808 = vmatpush1.msra.mxu0 0.0
  %809 = vmatprep.subr.mxu0 0.0
  %810 = vmatpush1.msra.mxu0 0.0
  %811 = vmatprep.subr.mxu0 0.0
  %812 = vmatpush1.msra.mxu0 0.0
  %813 = vmatprep.subr.mxu0 0.0
  %814 = vmatpush1.msra.mxu0 0.0
  %815 = vmatprep.subr.mxu0 0.0
  %816 = vmatpush1.msra.mxu0 0.0
  %817 = vmatprep.subr.mxu0 0.0
  %818 = vmatpush1.msra.mxu0 0.0
  %819 = vmatprep.mubr.f32.mxu0 0.0
  %820 = vmatmul.mubr.f32.gmra.mrb[0].mxu0 %v753
  %v821 = vpop.f32.mrb[0].mxu0
  %v822 = vadd.f32 0.0, %v821
  %v823 = vpop.f32.mrb[0].mxu0
  %824 = vdwg.mxu0
  %v825 = vadd.f32 %v248, %v822
  %v826 = vxor.u32 %v825, 2147483648
  %v827 = vmul.f32 %v826, 1.442695
  %v828 = vpow.pop %v827
  %v829 = vadd.f32 %v828, 1.0
  %v830 = vrcp.pop %v829
  %v831 = vmul.f32 1.0, %v830
  %v832 = vtanh.pop %v825
  %v833 = vmul.f32 %v831, %v743
  %835 = vrot.lane.b32.xlu0 %v832, 64
  %v836 = vpop.permute.xlu0 %835
  %v838 = vmul.f32 %v831, %v836
  %840 = vrot.lane.b32.xlu0 %v838, 32
  %v841 = vpop.permute.xlu0 %840
  %v843 = vadd.f32 %v833, %v841
  %v844 = vtanh.pop %v843
  %846 = vrot.lane.b32.xlu0 %v844, 64
  %v847 = vpop.permute.xlu0 %846
  %v849 = vmul.f32 %v831, %v847
  %v850 = vld [vmem:[%s0 + $0x30] sm:$0xff]
  %852 = vset.pattern.permute.xlu0 0
  %853 = vperm.xlu0 %852, %v850
  %v854 = vpop.permute.xlu0 %853
  %v856 = vmul.f32 %v849, %v854
  %v857 = vlaneseq
  %v858 = vshrl.u32 %v857, 7
  %v859 = vsub.s32 0, %v858
  %v860 = vrot.slane %v22, %v859
  %862 = vrot.lane.b32.xlu0 %v856, 32
  %v863 = vpop.permute.xlu0 %862
  %v864 = vsel %vm251, %v863, 0
  %866 = vmatprep.subr.mxu0 0.0
  %867 = vmatpush1.msra.mxu0 %v18
  %868 = vmatprep.subr.mxu0 0.0
  %869 = vmatpush1.msra.mxu0 %v19
  %870 = vmatprep.subr.mxu0 0.0
  %871 = vmatpush1.msra.mxu0 %v20
  %872 = vmatprep.subr.mxu0 0.0
  %873 = vmatpush1.msra.mxu0 %v21
  %874 = vmatprep.subr.mxu0 0.0
  %875 = vmatpush1.msra.mxu0 0.0
  %876 = vmatprep.subr.mxu0 0.0
  %877 = vmatpush1.msra.mxu0 0.0
  %878 = vmatprep.subr.mxu0 0.0
  %879 = vmatpush1.msra.mxu0 0.0
  %880 = vmatprep.subr.mxu0 0.0
  %881 = vmatpush1.msra.mxu0 0.0
  %882 = vmatprep.subr.mxu0 0.0
  %883 = vmatpush1.msra.mxu0 0.0
  %884 = vmatprep.subr.mxu0 0.0
  %885 = vmatpush1.msra.mxu0 0.0
  %886 = vmatprep.subr.mxu0 0.0
  %887 = vmatpush1.msra.mxu0 0.0
  %888 = vmatprep.subr.mxu0 0.0
  %889 = vmatpush1.msra.mxu0 0.0
  %890 = vmatprep.subr.mxu0 0.0
  %891 = vmatpush1.msra.mxu0 0.0
  %892 = vmatprep.subr.mxu0 0.0
  %893 = vmatpush1.msra.mxu0 0.0
  %894 = vmatprep.subr.mxu0 0.0
  %895 = vmatpush1.msra.mxu0 0.0
  %896 = vmatprep.subr.mxu0 0.0
  %897 = vmatpush1.msra.mxu0 0.0
  %898 = vmatprep.subr.mxu0 0.0
  %899 = vmatpush1.msra.mxu0 0.0
  %900 = vmatprep.subr.mxu0 0.0
  %901 = vmatpush1.msra.mxu0 0.0
  %902 = vmatprep.subr.mxu0 0.0
  %903 = vmatpush1.msra.mxu0 0.0
  %904 = vmatprep.subr.mxu0 0.0
  %905 = vmatpush1.msra.mxu0 0.0
  %906 = vmatprep.subr.mxu0 0.0
  %907 = vmatpush1.msra.mxu0 0.0
  %908 = vmatprep.subr.mxu0 0.0
  %909 = vmatpush1.msra.mxu0 0.0
  %910 = vmatprep.subr.mxu0 0.0
  %911 = vmatpush1.msra.mxu0 0.0
  %912 = vmatprep.subr.mxu0 0.0
  %913 = vmatpush1.msra.mxu0 0.0
  %914 = vmatprep.subr.mxu0 0.0
  %915 = vmatpush1.msra.mxu0 0.0
  %916 = vmatprep.subr.mxu0 0.0
  %917 = vmatpush1.msra.mxu0 0.0
  %918 = vmatprep.subr.mxu0 0.0
  %919 = vmatpush1.msra.mxu0 0.0
  %920 = vmatprep.subr.mxu0 0.0
  %921 = vmatpush1.msra.mxu0 0.0
  %922 = vmatprep.subr.mxu0 0.0
  %923 = vmatpush1.msra.mxu0 0.0
  %924 = vmatprep.subr.mxu0 0.0
  %925 = vmatpush1.msra.mxu0 0.0
  %926 = vmatprep.subr.mxu0 0.0
  %927 = vmatpush1.msra.mxu0 0.0
  %928 = vmatprep.subr.mxu0 0.0
  %929 = vmatpush1.msra.mxu0 0.0
  %930 = vmatprep.mubr.f32.mxu0 0.0
  %931 = vmatmul.mubr.f32.gmra.mrb[0].mxu0 %v864
  %v932 = vpop.f32.mrb[0].mxu0
  %v933 = vadd.f32 %v860, %v932
  %v934 = vpop.f32.mrb[0].mxu0
  %935 = vdwg.mxu0
  %v936 = vxor.u32 %v933, 2147483648
  %v937 = vmul.f32 %v936, 1.442695
  %v938 = vpow.pop %v937
  %v939 = vadd.f32 %v938, 1.0
  %v940 = vrcp.pop %v939
  %v941 = vmul.f32 1.0, %v940
  %v942 = vlaneseq
  %v943 = vshrl.u32 %v942, 7
  %v944 = vsub.s32 0, %v943
  %v945 = vrot.slane %v39, %v944
  %946 = vmatprep.subr.mxu0 0.0
  %947 = vmatpush1.msra.mxu0 %v23
  %948 = vmatprep.subr.mxu0 0.0
  %949 = vmatpush1.msra.mxu0 %v24
  %950 = vmatprep.subr.mxu0 0.0
  %951 = vmatpush1.msra.mxu0 %v25
  %952 = vmatprep.subr.mxu0 0.0
  %953 = vmatpush1.msra.mxu0 %v26
  %954 = vmatprep.subr.mxu0 0.0
  %955 = vmatpush1.msra.mxu0 %v27
  %956 = vmatprep.subr.mxu0 0.0
  %957 = vmatpush1.msra.mxu0 %v28
  %958 = vmatprep.subr.mxu0 0.0
  %959 = vmatpush1.msra.mxu0 %v29
  %960 = vmatprep.subr.mxu0 0.0
  %961 = vmatpush1.msra.mxu0 %v30
  %962 = vmatprep.subr.mxu0 0.0
  %963 = vmatpush1.msra.mxu0 %v31
  %964 = vmatprep.subr.mxu0 0.0
  %965 = vmatpush1.msra.mxu0 %v32
  %966 = vmatprep.subr.mxu0 0.0
  %967 = vmatpush1.msra.mxu0 %v33
  %968 = vmatprep.subr.mxu0 0.0
  %969 = vmatpush1.msra.mxu0 %v34
  %970 = vmatprep.subr.mxu0 0.0
  %971 = vmatpush1.msra.mxu0 %v35
  %972 = vmatprep.subr.mxu0 0.0
  %973 = vmatpush1.msra.mxu0 %v36
  %974 = vmatprep.subr.mxu0 0.0
  %975 = vmatpush1.msra.mxu0 %v37
  %976 = vmatprep.subr.mxu0 0.0
  %977 = vmatpush1.msra.mxu0 %v38
  %978 = vmatprep.subr.mxu0 0.0
  %979 = vmatpush1.msra.mxu0 0.0
  %980 = vmatprep.subr.mxu0 0.0
  %981 = vmatpush1.msra.mxu0 0.0
  %982 = vmatprep.subr.mxu0 0.0
  %983 = vmatpush1.msra.mxu0 0.0
  %984 = vmatprep.subr.mxu0 0.0
  %985 = vmatpush1.msra.mxu0 0.0
  %986 = vmatprep.subr.mxu0 0.0
  %987 = vmatpush1.msra.mxu0 0.0
  %988 = vmatprep.subr.mxu0 0.0
  %989 = vmatpush1.msra.mxu0 0.0
  %990 = vmatprep.subr.mxu0 0.0
  %991 = vmatpush1.msra.mxu0 0.0
  %992 = vmatprep.subr.mxu0 0.0
  %993 = vmatpush1.msra.mxu0 0.0
  %994 = vmatprep.subr.mxu0 0.0
  %995 = vmatpush1.msra.mxu0 0.0
  %996 = vmatprep.subr.mxu0 0.0
  %997 = vmatpush1.msra.mxu0 0.0
  %998 = vmatprep.subr.mxu0 0.0
  %999 = vmatpush1.msra.mxu0 0.0
  %1000 = vmatprep.subr.mxu0 0.0
  %1001 = vmatpush1.msra.mxu0 0.0
  %1002 = vmatprep.subr.mxu0 0.0
  %1003 = vmatpush1.msra.mxu0 0.0
  %1004 = vmatprep.subr.mxu0 0.0
  %1005 = vmatpush1.msra.mxu0 0.0
  %1006 = vmatprep.subr.mxu0 0.0
  %1007 = vmatpush1.msra.mxu0 0.0
  %1008 = vmatprep.subr.mxu0 0.0
  %1009 = vmatpush1.msra.mxu0 0.0
  %1010 = vmatprep.mubr.f32.mxu0 0.0
  %1011 = vmatmul.mubr.f32.gmra.mrb[0].mxu0 %v941
  %v1012 = vpop.f32.mrb[0].mxu0
  %v1013 = vadd.f32 %v945, %v1012
  %v1014 = vpop.f32.mrb[0].mxu0
  %1015 = vdwg.mxu0
  %vm1016 = vcmp.lt.s32.totalorder %v53, 15
  %v1017 = vsel %vm1016, %v1013, -1e+30
  %1018 = vmax.xlane.f32.xlu0 %v1017
  %v1019 = vpop.xlane.xlu0 %1018
  %v1020 = vsub.f32 %v1017, %v1019
  %v1021 = vmul.f32 %v1020, 1.442695
  %v1022 = vpow.pop %v1021
  %1023 = vadd.xlane.f32.xlu0 %v1022
  %v1024 = vpop.xlane.xlu0 %1023
  %v1025 = vlog2.pop %v1024
  %v1026 = vmul.f32 %v1025, 0.6931472
  %v1027 = vadd.f32 %v1026, %v1019
  %v1028 = vsub.f32 %v1013, %v1027
  %v1029 = vsel %vm1016, %v1028, %v1013
  %1030 = vst [vmem:[%s2] sm:$0xff] %v1029
  // Predicated region
  $region10: #{erpp_forward.1} parent=0 // pred_check
    _
  $region11: #{erpp_forward.1} parent=0 // pred_check_branch
    %1032 = sbr.rel (0) target = $region13
  $region12: #{erpp_forward.1} parent=0 // pred_region
    _
  $region13: #{erpp_forward.1} parent=0 // pred_fallthru
    _
  // Predicated region
  $region14: #{erpp_forward.1} parent=0 // pred_check
    _
  $region15: #{erpp_forward.1} parent=0 // pred_check_branch
    %1034 = sbr.rel (0) target = $region17
  $region16: #{erpp_forward.1} parent=0 // pred_region
    _
  $region17: #{erpp_forward.1} parent=0 // pred_fallthru
    _

</llo_original>
